<compile_context>
chip_gen: v5e
topology: v5e:2x2
jax: 0.10.0
libtpu: 0.0.40
codegen_flags: <defaults>
</compile_context>

<pallas_src>
import jax
import jax.numpy as jnp
import numpy as np
from jax.experimental import pallas as pl
from jax.experimental.pallas import tpu as pltpu


def _round_up(x, m):
    return (x + m - 1) // m * m


_MAX_TILE_M = 512  # rows per grid step; conservative for v7x 64 MiB VMEM


# ----------------------------- Pallas kernels ------------------------------


def _conv_mm_kernel(p_ref, w_ref, b_ref, o_ref):
    """One M-row tile of: im2col patches @ weight + bias, ReLU."""
    acc = jnp.dot(p_ref[...], w_ref[...], preferred_element_type=jnp.float32)
    o_ref[...] = jnp.maximum(acc + b_ref[...], 0.0)


def _tail_kernel(p4_ref, w4_ref, b4_ref, wh_ref, bh_ref, o_ref):
    """Fused conv4 (2x2, stride 1) + ReLU + three 1x1 heads + softmaxes.

    p4_ref : (tm, 256)  conv4 im2col patches
    w4_ref : (256, 128) conv4 weight,  b4_ref (1, 128) bias
    wh_ref : (128, 8)   [cls(2) | rot(2) | bbox(3) | pad(1)] head weights
    bh_ref : (1, 8)     matching biases (pad column = 0)
    o_ref  : (tm, 8)    [cls softmax | rot softmax | bbox | 0]
    """
    feat = jnp.maximum(
        jnp.dot(p4_ref[...], w4_ref[...], preferred_element_type=jnp.float32)
        + b4_ref[...], 0.0)
    z = jnp.dot(feat, wh_ref[...],
                preferred_element_type=jnp.float32) + bh_ref[...]

    def softmax2(a):
        m = jnp.max(a, axis=-1, keepdims=True)
        e = jnp.exp(a - m)
        inv = pl.reciprocal(jnp.sum(e, axis=-1, keepdims=True), approx=False)
        return e * inv

    cls = softmax2(z[:, 0:2])
    rot = softmax2(z[:, 2:4])
    bbox = z[:, 4:7]
    pad = jnp.zeros_like(z[:, 7:8])
    o_ref[...] = jnp.concatenate([cls, rot, bbox, pad], axis=-1)


# ------------------------------- JAX glue ----------------------------------


def _im2col(x_nhwc, kh, kw, stride):
    """Extract conv patches. Column order is (kh, kw, cin)."""
    # TODO(synk): move patch extraction into the kernel (strided ref slices)
    # to avoid the 9x activation duplication on the 3x3 layers at scale.
    n, h, w, c = x_nhwc.shape
    oh = (h - kh) // stride + 1
    ow = (w - kw) // stride + 1
    cols = []
    for i in range(kh):
        for j in range(kw):
            patch = x_nhwc[:,
                           i:i + stride * (oh - 1) + 1:stride,
                           j:j + stride * (ow - 1) + 1:stride,
                           :]
            cols.append(patch)
    patches = jnp.concatenate(cols, axis=-1)          # (N, OH, OW, KH*KW*C)
    return patches.reshape(n * oh * ow, kh * kw * c), (n, oh, ow)


def _pad_rows(a, m_pad):
    m = a.shape[0]
    if m_pad == m:
        return a
    return jnp.pad(a, ((0, m_pad - m), (0, 0)))


def conv_relu_pallas(x_nhwc, w_pt, b, stride):
    """Valid conv (no padding), PyTorch OIHW weights, im2col + tiled matmul."""
    cout, cin, kh, kw = w_pt.shape
    patches, (n, oh, ow) = _im2col(x_nhwc, kh, kw, stride)
    m, k = patches.shape
    tile_m = min(_MAX_TILE_M, _round_up(m, 8))
    m_pad = _round_up(m, tile_m)
    patches = _pad_rows(patches, m_pad)

    # (Cout, Cin, KH, KW) -> (KH, KW, Cin, Cout) -> (KH*KW*Cin, Cout)
    w_mat = jnp.transpose(w_pt, (2, 3, 1, 0)).reshape(k, cout)
    b_row = b.reshape(1, cout)

    out = pl.pallas_call(
        _conv_mm_kernel,
        out_shape=jax.ShapeDtypeStruct((m_pad, cout), jnp.float32),
        grid=(pl.cdiv(m_pad, tile_m),),
        in_specs=[
            pl.BlockSpec((tile_m, k), lambda i: (i, 0)),   # pipelined row tiles
            pl.BlockSpec((k, cout), lambda i: (0, 0)),     # weight resident
            pl.BlockSpec((1, cout), lambda i: (0, 0)),     # bias resident
        ],
        out_specs=pl.BlockSpec((tile_m, cout), lambda i: (i, 0)),
        compiler_params=pltpu.CompilerParams(
            dimension_semantics=("parallel",)),
    )(patches, w_mat, b_row)
    return out[:m].reshape(n, oh, ow, cout)


def _fused_tail(x_nhwc, params):
    """conv4 + ReLU + (cls softmax, rotate softmax, bbox) in one pallas_call."""
    patches, (n, oh, ow) = _im2col(x_nhwc, 2, 2, 1)
    m, k4 = patches.shape                                  # k4 = 2*2*64 = 256
    tile_m = min(_MAX_TILE_M, _round_up(m, 8))
    m_pad = _round_up(m, tile_m)
    patches = _pad_rows(patches, m_pad)

    c4 = params["w4"].shape[0]                             # 128
    w4 = jnp.transpose(params["w4"], (2, 3, 1, 0)).reshape(k4, c4)
    b4 = params["b4"].reshape(1, c4)

    # 1x1-conv heads -> one (128, 8) matmul weight: [cls | rot | bbox | pad0]
    wc = params["w_cls"].reshape(2, c4).T
    wr = params["w_rot"].reshape(2, c4).T
    wb = params["w_bbox"].reshape(3, c4).T
    w_heads = jnp.concatenate(
        [wc, wr, wb, jnp.zeros((c4, 1), jnp.float32)], axis=1)
    b_heads = jnp.concatenate(
        [params["b_cls"], params["b_rot"], params["b_bbox"],
         jnp.zeros((1,), jnp.float32)]).reshape(1, 8)

    out = pl.pallas_call(
        _tail_kernel,
        out_shape=jax.ShapeDtypeStruct((m_pad, 8), jnp.float32),
        grid=(pl.cdiv(m_pad, tile_m),),
        in_specs=[
            pl.BlockSpec((tile_m, k4), lambda i: (i, 0)),
            pl.BlockSpec((k4, c4), lambda i: (0, 0)),
            pl.BlockSpec((1, c4), lambda i: (0, 0)),
            pl.BlockSpec((c4, 8), lambda i: (0, 0)),
            pl.BlockSpec((1, 8), lambda i: (0, 0)),
        ],
        out_specs=pl.BlockSpec((tile_m, 8), lambda i: (i, 0)),
        compiler_params=pltpu.CompilerParams(
            dimension_semantics=("parallel",)),
    )(patches, w4, b4, w_heads, b_heads)

    out = out[:m].reshape(n, oh, ow, 8)

    def to_nchw(y):
        return jnp.transpose(y, (0, 3, 1, 2))

    return to_nchw(out[..., 0:2]), to_nchw(out[..., 2:4]), to_nchw(out[..., 4:7])


def pcn1_forward(x_nchw, params):
    x = jnp.transpose(x_nchw, (0, 2, 3, 1))  # NCHW -> NHWC
    x = conv_relu_pallas(x, params["w1"], params["b1"], stride=2)
    x = conv_relu_pallas(x, params["w2"], params["b2"], stride=2)
    x = conv_relu_pallas(x, params["w3"], params["b3"], stride=2)
    return _fused_tail(x, params)


# ---------------------- deterministic parameter init -----------------------


def _xavier_uniform(key, shape):
    cout, cin, kh, kw = shape
    fan_in = cin * kh * kw
    fan_out = cout * kh * kw
    bound = float(np.sqrt(6.0 / (fan_in + fan_out)))
    return jax.random.uniform(key, shape, jnp.float32, -bound, bound)


def init_params(key):
    shapes = {
        "w1": (16, 3, 3, 3),
        "w2": (32, 16, 3, 3),
        "w3": (64, 32, 3, 3),
        "w4": (128, 64, 2, 2),
        "w_rot": (2, 128, 1, 1),
        "w_cls": (2, 128, 1, 1),
        "w_bbox": (3, 128, 1, 1),
    }
    params = {}
    keys = jax.random.split(key, len(shapes))
    for k, (name, shp) in zip(keys, shapes.items()):
        params[name] = _xavier_uniform(k, shp)
        params[name.replace("w", "b", 1)] = jnp.full((shp[0],), 0.1, jnp.float32)
    return params


# ----------------------------- reference model ------------------------------


def reference_forward(x, params):
    def conv(h, w, b, stride):
        y = jax.lax.conv_general_dilated(
            h, w, (stride, stride), "VALID",
            dimension_numbers=("NCHW", "OIHW", "NCHW"))
        return y + b.reshape(1, -1, 1, 1)

    h = jax.nn.relu(conv(x, params["w1"], params["b1"], 2))
    h = jax.nn.relu(conv(h, params["w2"], params["b2"], 2))
    h = jax.nn.relu(conv(h, params["w3"], params["b3"], 2))
    h = jax.nn.relu(conv(h, params["w4"], params["b4"], 1))
    cls = jax.nn.softmax(conv(h, params["w_cls"], params["b_cls"], 1), axis=1)
    rot = jax.nn.softmax(conv(h, params["w_rot"], params["b_rot"], 1), axis=1)
    bbox = conv(h, params["w_bbox"], params["b_bbox"], 1)
    return cls, rot, bbox


if __name__ == "__main__":
    key = jax.random.PRNGKey(0)
    k_x, k_p = jax.random.split(key)

    # PCN1 operates on 24x24 crops: 24 -> 11 -> 5 -> 2 -> 1 spatially.
    x = jax.random.normal(k_x, (2, 3, 24, 24), dtype=jnp.float32)
    params = init_params(k_p)

    fwd = jax.jit(pcn1_forward)
    cls_prob, rotate, bbox = fwd(x, params)
    jax.block_until_ready((cls_prob, rotate, bbox))

    # quiet correctness check against an XLA reference
    ref = reference_forward(x, params)
    for got, want in zip((cls_prob, rotate, bbox), ref):
        assert got.shape == want.shape, (got.shape, want.shape)
        assert np.allclose(np.asarray(got), np.asarray(want),
                           rtol=1e-4, atol=1e-4)

    print("KERNEL_OK")
</pallas_src>

<mosaic_0001>
module attributes {stable_mosaic.version = 11 : i64} {
  func.func @_conv_mm_kernel(%arg0: i32, %arg1: memref<248x27xf32, #tpu.memory_space<vmem>>, %arg2: memref<27x16xf32, #tpu.memory_space<vmem>>, %arg3: memref<1x16xf32, #tpu.memory_space<vmem>>, %arg4: memref<248x16xf32, #tpu.memory_space<vmem>>) attributes {dimension_semantics = [#tpu.dimension_semantics<parallel>], iteration_bounds = array<i64: 1>, scalar_prefetch = 0 : i64, scratch_operands = 0 : i64, tpu.core_type = #tpu.core_type<tc>, window_params = [{transform_indices = @transform_0, window_bounds = array<i64: 248, 27>}, {pipeline_mode = #tpu.pipeline_mode<synchronous>, transform_indices = @transform_1, window_bounds = array<i64: 27, 16>}, {pipeline_mode = #tpu.pipeline_mode<synchronous>, transform_indices = @transform_2, window_bounds = array<i64: 1, 16>}, {transform_indices = @transform_3, window_bounds = array<i64: 248, 16>}]} {
    %c0 = arith.constant 0 : index
    %c0_0 = arith.constant 0 : index
    %0 = vector.load %arg1[%c0, %c0_0] : memref<248x27xf32, #tpu.memory_space<vmem>>, vector<248x27xf32>
    %c0_1 = arith.constant 0 : index
    %c0_2 = arith.constant 0 : index
    %1 = vector.load %arg2[%c0_1, %c0_2] : memref<27x16xf32, #tpu.memory_space<vmem>>, vector<27x16xf32>
    %cst = arith.constant dense<0.000000e+00> : vector<248x16xf32>
    %2 = tpu.matmul %0, %1, %cst {dimension_numbers = #tpu.dot_dimension_numbers<[1], [0], [0], [1], [0, 0, 1, 1], [], []>} : vector<248x27xf32>, vector<27x16xf32>, vector<248x16xf32> -> vector<248x16xf32>
    %c0_3 = arith.constant 0 : index
    %c0_4 = arith.constant 0 : index
    %3 = vector.load %arg3[%c0_3, %c0_4] : memref<1x16xf32, #tpu.memory_space<vmem>>, vector<1x16xf32>
    %4 = vector.broadcast %3 : vector<1x16xf32> to vector<248x16xf32>
    %5 = arith.addf %2, %4 : vector<248x16xf32>
    %cst_5 = arith.constant 0.000000e+00 : f32
    %6 = vector.broadcast %cst_5 : f32 to vector<248x16xf32>
    %7 = arith.maximumf %5, %6 : vector<248x16xf32>
    %c0_6 = arith.constant 0 : index
    %c0_7 = arith.constant 0 : index
    %8 = vector.load %arg4[%c0_6, %c0_7] : memref<248x16xf32, #tpu.memory_space<vmem>>, vector<248x16xf32>
    tpu.vector_store %arg4[%c0_6, %c0_7], %7 {strides = array<i32>} : memref<248x16xf32, #tpu.memory_space<vmem>>, vector<248x16xf32>,
    return
  }
  func.func @transform_0(%arg0: i32) -> (i32, i32) {
    %c0_i32 = arith.constant 0 : i32
    %c0_i32_0 = arith.constant 0 : i32
    return %arg0, %c0_i32 : i32, i32
  }
  func.func @transform_1(%arg0: i32) -> (i32, i32) {
    %c0_i32 = arith.constant 0 : i32
    %c0_i32_0 = arith.constant 0 : i32
    %c0_i32_1 = arith.constant 0 : i32
    return %c0_i32, %c0_i32_0 : i32, i32
  }
  func.func @transform_2(%arg0: i32) -> (i32, i32) {
    %c0_i32 = arith.constant 0 : i32
    %c0_i32_0 = arith.constant 0 : i32
    %c0_i32_1 = arith.constant 0 : i32
    return %c0_i32, %c0_i32_0 : i32, i32
  }
  func.func @transform_3(%arg0: i32) -> (i32, i32) {
    %c0_i32 = arith.constant 0 : i32
    %c0_i32_0 = arith.constant 0 : i32
    return %arg0, %c0_i32 : i32, i32
  }
}

module attributes {stable_mosaic.version = 11 : i64} {
  func.func @_conv_mm_kernel(%arg0: i32, %arg1: memref<56x144xf32, #tpu.memory_space<vmem>>, %arg2: memref<144x32xf32, #tpu.memory_space<vmem>>, %arg3: memref<1x32xf32, #tpu.memory_space<vmem>>, %arg4: memref<56x32xf32, #tpu.memory_space<vmem>>) attributes {dimension_semantics = [#tpu.dimension_semantics<parallel>], iteration_bounds = array<i64: 1>, scalar_prefetch = 0 : i64, scratch_operands = 0 : i64, tpu.core_type = #tpu.core_type<tc>, window_params = [{transform_indices = @transform_0, window_bounds = array<i64: 56, 144>}, {pipeline_mode = #tpu.pipeline_mode<synchronous>, transform_indices = @transform_1, window_bounds = array<i64: 144, 32>}, {pipeline_mode = #tpu.pipeline_mode<synchronous>, transform_indices = @transform_2, window_bounds = array<i64: 1, 32>}, {transform_indices = @transform_3, window_bounds = array<i64: 56, 32>}]} {
    %c0 = arith.constant 0 : index
    %c0_0 = arith.constant 0 : index
    %0 = vector.load %arg1[%c0, %c0_0] : memref<56x144xf32, #tpu.memory_space<vmem>>, vector<56x144xf32>
    %c0_1 = arith.constant 0 : index
    %c0_2 = arith.constant 0 : index
    %1 = vector.load %arg2[%c0_1, %c0_2] : memref<144x32xf32, #tpu.memory_space<vmem>>, vector<144x32xf32>
    %cst = arith.constant dense<0.000000e+00> : vector<56x32xf32>
    %2 = tpu.matmul %0, %1, %cst {dimension_numbers = #tpu.dot_dimension_numbers<[1], [0], [0], [1], [0, 0, 1, 1], [], []>} : vector<56x144xf32>, vector<144x32xf32>, vector<56x32xf32> -> vector<56x32xf32>
    %c0_3 = arith.constant 0 : index
    %c0_4 = arith.constant 0 : index
    %3 = vector.load %arg3[%c0_3, %c0_4] : memref<1x32xf32, #tpu.memory_space<vmem>>, vector<1x32xf32>
    %4 = vector.broadcast %3 : vector<1x32xf32> to vector<56x32xf32>
    %5 = arith.addf %2, %4 : vector<56x32xf32>
    %cst_5 = arith.constant 0.000000e+00 : f32
    %6 = vector.broadcast %cst_5 : f32 to vector<56x32xf32>
    %7 = arith.maximumf %5, %6 : vector<56x32xf32>
    %c0_6 = arith.constant 0 : index
    %c0_7 = arith.constant 0 : index
    %8 = vector.load %arg4[%c0_6, %c0_7] : memref<56x32xf32, #tpu.memory_space<vmem>>, vector<56x32xf32>
    tpu.vector_store %arg4[%c0_6, %c0_7], %7 {strides = array<i32>} : memref<56x32xf32, #tpu.memory_space<vmem>>, vector<56x32xf32>,
    return
  }
  func.func @transform_0(%arg0: i32) -> (i32, i32) {
    %c0_i32 = arith.constant 0 : i32
    %c0_i32_0 = arith.constant 0 : i32
    return %arg0, %c0_i32 : i32, i32
  }
  func.func @transform_1(%arg0: i32) -> (i32, i32) {
    %c0_i32 = arith.constant 0 : i32
    %c0_i32_0 = arith.constant 0 : i32
    %c0_i32_1 = arith.constant 0 : i32
    return %c0_i32, %c0_i32_0 : i32, i32
  }
  func.func @transform_2(%arg0: i32) -> (i32, i32) {
    %c0_i32 = arith.constant 0 : i32
    %c0_i32_0 = arith.constant 0 : i32
    %c0_i32_1 = arith.constant 0 : i32
    return %c0_i32, %c0_i32_0 : i32, i32
  }
  func.func @transform_3(%arg0: i32) -> (i32, i32) {
    %c0_i32 = arith.constant 0 : i32
    %c0_i32_0 = arith.constant 0 : i32
    return %arg0, %c0_i32 : i32, i32
  }
}

module attributes {stable_mosaic.version = 11 : i64} {
  func.func @_conv_mm_kernel(%arg0: i32, %arg1: memref<8x288xf32, #tpu.memory_space<vmem>>, %arg2: memref<288x64xf32, #tpu.memory_space<vmem>>, %arg3: memref<1x64xf32, #tpu.memory_space<vmem>>, %arg4: memref<8x64xf32, #tpu.memory_space<vmem>>) attributes {dimension_semantics = [#tpu.dimension_semantics<parallel>], iteration_bounds = array<i64: 1>, scalar_prefetch = 0 : i64, scratch_operands = 0 : i64, tpu.core_type = #tpu.core_type<tc>, window_params = [{transform_indices = @transform_0, window_bounds = array<i64: 8, 288>}, {pipeline_mode = #tpu.pipeline_mode<synchronous>, transform_indices = @transform_1, window_bounds = array<i64: 288, 64>}, {pipeline_mode = #tpu.pipeline_mode<synchronous>, transform_indices = @transform_2, window_bounds = array<i64: 1, 64>}, {transform_indices = @transform_3, window_bounds = array<i64: 8, 64>}]} {
    %c0 = arith.constant 0 : index
    %c0_0 = arith.constant 0 : index
    %0 = vector.load %arg1[%c0, %c0_0] : memref<8x288xf32, #tpu.memory_space<vmem>>, vector<8x288xf32>
    %c0_1 = arith.constant 0 : index
    %c0_2 = arith.constant 0 : index
    %1 = vector.load %arg2[%c0_1, %c0_2] : memref<288x64xf32, #tpu.memory_space<vmem>>, vector<288x64xf32>
    %cst = arith.constant dense<0.000000e+00> : vector<8x64xf32>
    %2 = tpu.matmul %0, %1, %cst {dimension_numbers = #tpu.dot_dimension_numbers<[1], [0], [0], [1], [0, 0, 1, 1], [], []>} : vector<8x288xf32>, vector<288x64xf32>, vector<8x64xf32> -> vector<8x64xf32>
    %c0_3 = arith.constant 0 : index
    %c0_4 = arith.constant 0 : index
    %3 = vector.load %arg3[%c0_3, %c0_4] : memref<1x64xf32, #tpu.memory_space<vmem>>, vector<1x64xf32>
    %4 = vector.broadcast %3 : vector<1x64xf32> to vector<8x64xf32>
    %5 = arith.addf %2, %4 : vector<8x64xf32>
    %cst_5 = arith.constant 0.000000e+00 : f32
    %6 = vector.broadcast %cst_5 : f32 to vector<8x64xf32>
    %7 = arith.maximumf %5, %6 : vector<8x64xf32>
    %c0_6 = arith.constant 0 : index
    %c0_7 = arith.constant 0 : index
    %8 = vector.load %arg4[%c0_6, %c0_7] : memref<8x64xf32, #tpu.memory_space<vmem>>, vector<8x64xf32>
    tpu.vector_store %arg4[%c0_6, %c0_7], %7 {strides = array<i32>} : memref<8x64xf32, #tpu.memory_space<vmem>>, vector<8x64xf32>,
    return
  }
  func.func @transform_0(%arg0: i32) -> (i32, i32) {
    %c0_i32 = arith.constant 0 : i32
    %c0_i32_0 = arith.constant 0 : i32
    return %arg0, %c0_i32 : i32, i32
  }
  func.func @transform_1(%arg0: i32) -> (i32, i32) {
    %c0_i32 = arith.constant 0 : i32
    %c0_i32_0 = arith.constant 0 : i32
    %c0_i32_1 = arith.constant 0 : i32
    return %c0_i32, %c0_i32_0 : i32, i32
  }
  func.func @transform_2(%arg0: i32) -> (i32, i32) {
    %c0_i32 = arith.constant 0 : i32
    %c0_i32_0 = arith.constant 0 : i32
    %c0_i32_1 = arith.constant 0 : i32
    return %c0_i32, %c0_i32_0 : i32, i32
  }
  func.func @transform_3(%arg0: i32) -> (i32, i32) {
    %c0_i32 = arith.constant 0 : i32
    %c0_i32_0 = arith.constant 0 : i32
    return %arg0, %c0_i32 : i32, i32
  }
}

module attributes {stable_mosaic.version = 11 : i64} {
  func.func @_tail_kernel(%arg0: i32, %arg1: memref<8x256xf32, #tpu.memory_space<vmem>>, %arg2: memref<256x128xf32, #tpu.memory_space<vmem>>, %arg3: memref<1x128xf32, #tpu.memory_space<vmem>>, %arg4: memref<128x8xf32, #tpu.memory_space<vmem>>, %arg5: memref<1x8xf32, #tpu.memory_space<vmem>>, %arg6: memref<8x8xf32, #tpu.memory_space<vmem>>) attributes {dimension_semantics = [#tpu.dimension_semantics<parallel>], iteration_bounds = array<i64: 1>, scalar_prefetch = 0 : i64, scratch_operands = 0 : i64, tpu.core_type = #tpu.core_type<tc>, window_params = [{transform_indices = @transform_0, window_bounds = array<i64: 8, 256>}, {pipeline_mode = #tpu.pipeline_mode<synchronous>, transform_indices = @transform_1, window_bounds = array<i64: 256, 128>}, {pipeline_mode = #tpu.pipeline_mode<synchronous>, transform_indices = @transform_2, window_bounds = array<i64: 1, 128>}, {pipeline_mode = #tpu.pipeline_mode<synchronous>, transform_indices = @transform_3, window_bounds = array<i64: 128, 8>}, {pipeline_mode = #tpu.pipeline_mode<synchronous>, transform_indices = @transform_4, window_bounds = array<i64: 1, 8>}, {transform_indices = @transform_5, window_bounds = array<i64: 8, 8>}]} {
    %c0 = arith.constant 0 : index
    %c0_0 = arith.constant 0 : index
    %0 = vector.load %arg1[%c0, %c0_0] : memref<8x256xf32, #tpu.memory_space<vmem>>, vector<8x256xf32>
    %c0_1 = arith.constant 0 : index
    %c0_2 = arith.constant 0 : index
    %1 = vector.load %arg2[%c0_1, %c0_2] : memref<256x128xf32, #tpu.memory_space<vmem>>, vector<256x128xf32>
    %cst = arith.constant dense<0.000000e+00> : vector<8x128xf32>
    %2 = tpu.matmul %0, %1, %cst {dimension_numbers = #tpu.dot_dimension_numbers<[1], [0], [0], [1], [0, 0, 1, 1], [], []>} : vector<8x256xf32>, vector<256x128xf32>, vector<8x128xf32> -> vector<8x128xf32>
    %c0_3 = arith.constant 0 : index
    %c0_4 = arith.constant 0 : index
    %3 = vector.load %arg3[%c0_3, %c0_4] : memref<1x128xf32, #tpu.memory_space<vmem>>, vector<1x128xf32>
    %4 = vector.broadcast %3 : vector<1x128xf32> to vector<8x128xf32>
    %5 = arith.addf %2, %4 : vector<8x128xf32>
    %cst_5 = arith.constant 0.000000e+00 : f32
    %6 = vector.broadcast %cst_5 : f32 to vector<8x128xf32>
    %7 = arith.maximumf %5, %6 : vector<8x128xf32>
    %c0_6 = arith.constant 0 : index
    %c0_7 = arith.constant 0 : index
    %8 = vector.load %arg4[%c0_6, %c0_7] : memref<128x8xf32, #tpu.memory_space<vmem>>, vector<128x8xf32>
    %cst_8 = arith.constant dense<0.000000e+00> : vector<8x8xf32>
    %9 = tpu.matmul %7, %8, %cst_8 {dimension_numbers = #tpu.dot_dimension_numbers<[1], [0], [0], [1], [0, 0, 1, 1], [], []>} : vector<8x128xf32>, vector<128x8xf32>, vector<8x8xf32> -> vector<8x8xf32>
    %c0_9 = arith.constant 0 : index
    %c0_10 = arith.constant 0 : index
    %10 = vector.load %arg5[%c0_9, %c0_10] : memref<1x8xf32, #tpu.memory_space<vmem>>, vector<1x8xf32>
    %11 = vector.broadcast %10 : vector<1x8xf32> to vector<8x8xf32>
    %12 = arith.addf %9, %11 : vector<8x8xf32>
    %13 = vector.extract_strided_slice %12 {offsets = [0, 0], sizes = [8, 2], strides = [1, 1]} : vector<8x8xf32> to vector<8x2xf32>
    %cst_11 = arith.constant dense<0xFF800000> : vector<8xf32>
    %14 = vector.multi_reduction <maximumf>, %13, %cst_11 [1] : vector<8x2xf32> to vector<8xf32>
    %15 = vector.shape_cast %14 : vector<8xf32> to vector<8x1xf32>
    %16 = vector.broadcast %15 : vector<8x1xf32> to vector<8x2xf32>
    %17 = arith.subf %13, %16 : vector<8x2xf32>
    %18 = math.exp %17 : vector<8x2xf32>
    %cst_12 = arith.constant dense<0.000000e+00> : vector<8xf32>
    %19 = vector.multi_reduction <add>, %18, %cst_12 [1] : vector<8x2xf32> to vector<8xf32>
    %20 = vector.shape_cast %19 : vector<8xf32> to vector<8x1xf32>
    %21 = tpu.reciprocal %20 : vector<8x1xf32> -> vector<8x1xf32>
    %22 = vector.broadcast %21 : vector<8x1xf32> to vector<8x2xf32>
    %23 = arith.mulf %18, %22 : vector<8x2xf32>
    %24 = vector.extract_strided_slice %12 {offsets = [0, 2], sizes = [8, 2], strides = [1, 1]} : vector<8x8xf32> to vector<8x2xf32>
    %cst_13 = arith.constant dense<0xFF800000> : vector<8xf32>
    %25 = vector.multi_reduction <maximumf>, %24, %cst_13 [1] : vector<8x2xf32> to vector<8xf32>
    %26 = vector.shape_cast %25 : vector<8xf32> to vector<8x1xf32>
    %27 = vector.broadcast %26 : vector<8x1xf32> to vector<8x2xf32>
    %28 = arith.subf %24, %27 : vector<8x2xf32>
    %29 = math.exp %28 : vector<8x2xf32>
    %cst_14 = arith.constant dense<0.000000e+00> : vector<8xf32>
    %30 = vector.multi_reduction <add>, %29, %cst_14 [1] : vector<8x2xf32> to vector<8xf32>
    %31 = vector.shape_cast %30 : vector<8xf32> to vector<8x1xf32>
    %32 = tpu.reciprocal %31 : vector<8x1xf32> -> vector<8x1xf32>
    %33 = vector.broadcast %32 : vector<8x1xf32> to vector<8x2xf32>
    %34 = arith.mulf %29, %33 : vector<8x2xf32>
    %35 = vector.extract_strided_slice %12 {offsets = [0, 4], sizes = [8, 3], strides = [1, 1]} : vector<8x8xf32> to vector<8x3xf32>
    %cst_15 = arith.constant 0.000000e+00 : f32
    %36 = vector.broadcast %cst_15 : f32 to vector<8x1xf32>
    %37 = tpu.concatenate %23, %34, %35, %36 in 1 : vector<8x2xf32>, vector<8x2xf32>, vector<8x3xf32>, vector<8x1xf32> -> vector<8x8xf32>
    %c0_16 = arith.constant 0 : index
    %c0_17 = arith.constant 0 : index
    %38 = vector.load %arg6[%c0_16, %c0_17] : memref<8x8xf32, #tpu.memory_space<vmem>>, vector<8x8xf32>
    tpu.vector_store %arg6[%c0_16, %c0_17], %37 {strides = array<i32>} : memref<8x8xf32, #tpu.memory_space<vmem>>, vector<8x8xf32>,
    return
  }
  func.func @transform_0(%arg0: i32) -> (i32, i32) {
    %c0_i32 = arith.constant 0 : i32
    %c0_i32_0 = arith.constant 0 : i32
    return %arg0, %c0_i32 : i32, i32
  }
  func.func @transform_1(%arg0: i32) -> (i32, i32) {
    %c0_i32 = arith.constant 0 : i32
    %c0_i32_0 = arith.constant 0 : i32
    %c0_i32_1 = arith.constant 0 : i32
    return %c0_i32, %c0_i32_0 : i32, i32
  }
  func.func @transform_2(%arg0: i32) -> (i32, i32) {
    %c0_i32 = arith.constant 0 : i32
    %c0_i32_0 = arith.constant 0 : i32
    %c0_i32_1 = arith.constant 0 : i32
    return %c0_i32, %c0_i32_0 : i32, i32
  }
  func.func @transform_3(%arg0: i32) -> (i32, i32) {
    %c0_i32 = arith.constant 0 : i32
    %c0_i32_0 = arith.constant 0 : i32
    %c0_i32_1 = arith.constant 0 : i32
    return %c0_i32, %c0_i32_0 : i32, i32
  }
  func.func @transform_4(%arg0: i32) -> (i32, i32) {
    %c0_i32 = arith.constant 0 : i32
    %c0_i32_0 = arith.constant 0 : i32
    %c0_i32_1 = arith.constant 0 : i32
    return %c0_i32, %c0_i32_0 : i32, i32
  }
  func.func @transform_5(%arg0: i32) -> (i32, i32) {
    %c0_i32 = arith.constant 0 : i32
    %c0_i32_0 = arith.constant 0 : i32
    return %arg0, %c0_i32 : i32, i32
  }
}

</mosaic_0001>

<llo_original>
// kernel: pcn1_forward.4
$region0: #{pcn1_forward.4}
  #allocation0 [shape = 'u32[]', space=smem, size = 0x4, offset = 0x4, fixed_abs, tag = 'smem constant byte address 0x4 - core index']
  #allocation1 [shape = 'u32[72,128]{1,0:T(1,128)}', space=vmem, size = 0x9000, scoped, tag = 'internal scratch']
  %s0 = inlined_call_operand.vmem [shape: f32[248,27], index: 0, kind: input, shape index: {}]
  %s1 = inlined_call_operand.vmem [shape: f32[27,16], index: 1, kind: input, shape index: {}]
  %s2 = inlined_call_operand.vmem [shape: f32[1,16], index: 2, kind: input, shape index: {}]
  %s3 = inlined_call_operand.vmem [shape: f32[248,16], index: 3, kind: output, shape index: {}]
  %s4 = sld [smem:[#allocation0]]
  $region22: #{pcn1_forward.4} parent=0
    _
  %s6 = ssub.s32 1, %s4
  %s7 = scalar_select 0, %s6, %s4
  // Predicated region
  $region2: #{pcn1_forward.4} parent=0 // pred_check
    _
  $region3: #{pcn1_forward.4} parent=0 // pred_check_branch
    %9 = sbr.rel (0) target = $region5
  $region4: #{pcn1_forward.4} parent=0 // pred_region
    _
  $region5: #{pcn1_forward.4} parent=0 // pred_fallthru
    _
  // Predicated region
  $region6: #{pcn1_forward.4} parent=0 // pred_check
    _
  $region7: #{pcn1_forward.4} parent=0 // pred_check_branch
    %11 = sbr.rel (0) target = $region9
  $region8: #{pcn1_forward.4} parent=0 // pred_region
    _
  $region9: #{pcn1_forward.4} parent=0 // pred_fallthru
    _
  // Predicated region
  $region10: #{pcn1_forward.4} parent=0 // pred_check
    _
  $region11: #{pcn1_forward.4} parent=0 // pred_check_branch
    %13 = sbr.rel (0) target = $region13
  $region12: #{pcn1_forward.4} parent=0 // pred_region
    _
  $region13: #{pcn1_forward.4} parent=0 // pred_fallthru
    _
  %v14 = vld [vmem:[%s0] sm:$0xff]
  %v15 = vld [vmem:[%s0 + $0x8] sm:$0xff]
  %v16 = vld [vmem:[%s0 + $0x10] sm:$0xff]
  %v17 = vld [vmem:[%s0 + $0x18] sm:$0xff]
  %v18 = vld [vmem:[%s0 + $0x20] sm:$0xff]
  %v19 = vld [vmem:[%s0 + $0x28] sm:$0xff]
  %v20 = vld [vmem:[%s0 + $0x30] sm:$0xff]
  %v21 = vld [vmem:[%s0 + $0x38] sm:$0xff]
  %v22 = vld [vmem:[%s0 + $0x40] sm:$0xff]
  %v23 = vld [vmem:[%s0 + $0x48] sm:$0xff]
  %v24 = vld [vmem:[%s0 + $0x50] sm:$0xff]
  %v25 = vld [vmem:[%s0 + $0x58] sm:$0xff]
  %v26 = vld [vmem:[%s0 + $0x60] sm:$0xff]
  %v27 = vld [vmem:[%s0 + $0x68] sm:$0xff]
  %v28 = vld [vmem:[%s0 + $0x70] sm:$0xff]
  %v29 = vld [vmem:[%s0 + $0x78] sm:$0xff]
  %v30 = vld [vmem:[%s0 + $0x80] sm:$0xff]
  %v31 = vld [vmem:[%s0 + $0x88] sm:$0xff]
  %v32 = vld [vmem:[%s0 + $0x90] sm:$0xff]
  %v33 = vld [vmem:[%s0 + $0x98] sm:$0xff]
  %v34 = vld [vmem:[%s0 + $0xa0] sm:$0xff]
  %v35 = vld [vmem:[%s0 + $0xa8] sm:$0xff]
  %v36 = vld [vmem:[%s0 + $0xb0] sm:$0xff]
  %v37 = vld [vmem:[%s0 + $0xb8] sm:$0xff]
  %v38 = vld [vmem:[%s0 + $0xc0] sm:$0xff]
  %v39 = vld [vmem:[%s0 + $0xc8] sm:$0xff]
  %v40 = vld [vmem:[%s0 + $0xd0] sm:$0xff]
  %v41 = vld [vmem:[%s0 + $0xd8] sm:$0xff]
  %v42 = vld [vmem:[%s0 + $0xe0] sm:$0xff]
  %v43 = vld [vmem:[%s0 + $0xe8] sm:$0xff]
  %v44 = vld [vmem:[%s0 + $0xf0] sm:$0xff]
  %v45 = vld [vmem:[%s1] sm:$0xff]
  %v46 = vld [vmem:[%s1 + $0x8] sm:$0xff]
  %v47 = vld [vmem:[%s1 + $0x10] sm:$0xff]
  %v48 = vld [vmem:[%s1 + $0x18] sm:$0x7]
  %v49 = vld [vmem:[%s2] sm:$0x1]
  %v51 = vperm.slane %v49, 0
  %vm53 = vcmask 220160
  %v55 = vsel %vm53, %v14, 0
  %v58 = vsel %vm53, %v15, 0
  %v61 = vsel %vm53, %v16, 0
  %v64 = vsel %vm53, %v17, 0
  %v67 = vsel %vm53, %v18, 0
  %v70 = vsel %vm53, %v19, 0
  %v73 = vsel %vm53, %v20, 0
  %v76 = vsel %vm53, %v21, 0
  %v79 = vsel %vm53, %v22, 0
  %v82 = vsel %vm53, %v23, 0
  %v85 = vsel %vm53, %v24, 0
  %v88 = vsel %vm53, %v25, 0
  %v91 = vsel %vm53, %v26, 0
  %v94 = vsel %vm53, %v27, 0
  %v97 = vsel %vm53, %v28, 0
  %v100 = vsel %vm53, %v29, 0
  %v103 = vsel %vm53, %v30, 0
  %v106 = vsel %vm53, %v31, 0
  %v109 = vsel %vm53, %v32, 0
  %v112 = vsel %vm53, %v33, 0
  %v115 = vsel %vm53, %v34, 0
  %v118 = vsel %vm53, %v35, 0
  %v121 = vsel %vm53, %v36, 0
  %v124 = vsel %vm53, %v37, 0
  %v127 = vsel %vm53, %v38, 0
  %v130 = vsel %vm53, %v39, 0
  %v133 = vsel %vm53, %v40, 0
  %v136 = vsel %vm53, %v41, 0
  %v139 = vsel %vm53, %v42, 0
  %v142 = vsel %vm53, %v43, 0
  %v145 = vsel %vm53, %v44, 0
  %vm147 = vcmask 1042432
  %v149 = vsel %vm147, %v48, 0
  %151 = vmatpush.msra.mxu0 0.0
  %152 = vmatpush.msra.mxu0 0.0
  %153 = vmatpush.msra.mxu0 0.0
  %154 = vmatpush.msra.mxu0 0.0
  %155 = vmatpush.msra.mxu0 0.0
  %156 = vmatpush.msra.mxu0 0.0
  %157 = vmatpush.msra.mxu0 0.0
  %158 = vmatpush.msra.mxu0 0.0
  %159 = vmatpush.msra.mxu0 0.0
  %160 = vmatpush.msra.mxu0 0.0
  %161 = vmatpush.msra.mxu0 0.0
  %162 = vmatpush.msra.mxu0 0.0
  %163 = vmatpush.msra.mxu0 %v149
  %164 = vmatpush.msra.mxu0 %v47
  %165 = vmatpush.msra.mxu0 %v46
  %166 = vmatpush.msra.mxu0 %v45
  %167 = vmatmul.f32.gmra.mxu0 %v55
  %v168 = vpop.f32.mrf.mxu0
  %v169 = vadd.f32 %v51, %v168
  %170 = vmatmul.f32.gmra.mxu0 %v58
  %v171 = vpop.f32.mrf.mxu0
  %v172 = vadd.f32 %v51, %v171
  %173 = vmatmul.f32.gmra.mxu0 %v61
  %v174 = vpop.f32.mrf.mxu0
  %v175 = vadd.f32 %v51, %v174
  %176 = vmatmul.f32.gmra.mxu0 %v64
  %v177 = vpop.f32.mrf.mxu0
  %v178 = vadd.f32 %v51, %v177
  %179 = vmatmul.f32.gmra.mxu0 %v67
  %v180 = vpop.f32.mrf.mxu0
  %v181 = vadd.f32 %v51, %v180
  %182 = vmatmul.f32.gmra.mxu0 %v70
  %v183 = vpop.f32.mrf.mxu0
  %v184 = vadd.f32 %v51, %v183
  %185 = vmatmul.f32.gmra.mxu0 %v73
  %v186 = vpop.f32.mrf.mxu0
  %v187 = vadd.f32 %v51, %v186
  %188 = vmatmul.f32.gmra.mxu0 %v76
  %v189 = vpop.f32.mrf.mxu0
  %v190 = vadd.f32 %v51, %v189
  %191 = vmatmul.f32.gmra.mxu0 %v79
  %v192 = vpop.f32.mrf.mxu0
  %v193 = vadd.f32 %v51, %v192
  %194 = vmatmul.f32.gmra.mxu0 %v82
  %v195 = vpop.f32.mrf.mxu0
  %v196 = vadd.f32 %v51, %v195
  %197 = vmatmul.f32.gmra.mxu0 %v85
  %v198 = vpop.f32.mrf.mxu0
  %v199 = vadd.f32 %v51, %v198
  %200 = vmatmul.f32.gmra.mxu0 %v88
  %v201 = vpop.f32.mrf.mxu0
  %v202 = vadd.f32 %v51, %v201
  %203 = vmatmul.f32.gmra.mxu0 %v91
  %v204 = vpop.f32.mrf.mxu0
  %v205 = vadd.f32 %v51, %v204
  %206 = vmatmul.f32.gmra.mxu0 %v94
  %v207 = vpop.f32.mrf.mxu0
  %v208 = vadd.f32 %v51, %v207
  %209 = vmatmul.f32.gmra.mxu0 %v97
  %v210 = vpop.f32.mrf.mxu0
  %v211 = vadd.f32 %v51, %v210
  %212 = vmatmul.f32.gmra.mxu0 %v100
  %v213 = vpop.f32.mrf.mxu0
  %v214 = vadd.f32 %v51, %v213
  %215 = vmatmul.f32.gmra.mxu0 %v103
  %v216 = vpop.f32.mrf.mxu0
  %v217 = vadd.f32 %v51, %v216
  %218 = vmatmul.f32.gmra.mxu0 %v106
  %v219 = vpop.f32.mrf.mxu0
  %v220 = vadd.f32 %v51, %v219
  %221 = vmatmul.f32.gmra.mxu0 %v109
  %v222 = vpop.f32.mrf.mxu0
  %v223 = vadd.f32 %v51, %v222
  %224 = vmatmul.f32.gmra.mxu0 %v112
  %v225 = vpop.f32.mrf.mxu0
  %v226 = vadd.f32 %v51, %v225
  %227 = vmatmul.f32.gmra.mxu0 %v115
  %v228 = vpop.f32.mrf.mxu0
  %v229 = vadd.f32 %v51, %v228
  %230 = vmatmul.f32.gmra.mxu0 %v118
  %v231 = vpop.f32.mrf.mxu0
  %v232 = vadd.f32 %v51, %v231
  %233 = vmatmul.f32.gmra.mxu0 %v121
  %v234 = vpop.f32.mrf.mxu0
  %v235 = vadd.f32 %v51, %v234
  %236 = vmatmul.f32.gmra.mxu0 %v124
  %v237 = vpop.f32.mrf.mxu0
  %v238 = vadd.f32 %v51, %v237
  %239 = vmatmul.f32.gmra.mxu0 %v127
  %v240 = vpop.f32.mrf.mxu0
  %v241 = vadd.f32 %v51, %v240
  %242 = vmatmul.f32.gmra.mxu0 %v130
  %v243 = vpop.f32.mrf.mxu0
  %v244 = vadd.f32 %v51, %v243
  %245 = vmatmul.f32.gmra.mxu0 %v133
  %v246 = vpop.f32.mrf.mxu0
  %v247 = vadd.f32 %v51, %v246
  %248 = vmatmul.f32.gmra.mxu0 %v136
  %v249 = vpop.f32.mrf.mxu0
  %v250 = vadd.f32 %v51, %v249
  %251 = vmatmul.f32.gmra.mxu0 %v139
  %v252 = vpop.f32.mrf.mxu0
  %v253 = vadd.f32 %v51, %v252
  %254 = vmatmul.f32.gmra.mxu0 %v142
  %v255 = vpop.f32.mrf.mxu0
  %v256 = vadd.f32 %v51, %v255
  %257 = vmatmul.f32.gmra.mxu0 %v145
  %v258 = vpop.f32.mrf.mxu0
  %v259 = vadd.f32 %v51, %v258
  %260 = vdwg.mxu0
  %v261 = vmax.f32 %v169, 0.0
  %v262 = vmax.f32 %v172, 0.0
  %v263 = vmax.f32 %v175, 0.0
  %v264 = vmax.f32 %v178, 0.0
  %v265 = vmax.f32 %v181, 0.0
  %v266 = vmax.f32 %v184, 0.0
  %v267 = vmax.f32 %v187, 0.0
  %v268 = vmax.f32 %v190, 0.0
  %v269 = vmax.f32 %v193, 0.0
  %v270 = vmax.f32 %v196, 0.0
  %v271 = vmax.f32 %v199, 0.0
  %v272 = vmax.f32 %v202, 0.0
  %v273 = vmax.f32 %v205, 0.0
  %v274 = vmax.f32 %v208, 0.0
  %v275 = vmax.f32 %v211, 0.0
  %v276 = vmax.f32 %v214, 0.0
  %v277 = vmax.f32 %v217, 0.0
  %v278 = vmax.f32 %v220, 0.0
  %v279 = vmax.f32 %v223, 0.0
  %v280 = vmax.f32 %v226, 0.0
  %v281 = vmax.f32 %v229, 0.0
  %v282 = vmax.f32 %v232, 0.0
  %v283 = vmax.f32 %v235, 0.0
  %v284 = vmax.f32 %v238, 0.0
  %v285 = vmax.f32 %v241, 0.0
  %v286 = vmax.f32 %v244, 0.0
  %v287 = vmax.f32 %v247, 0.0
  %v288 = vmax.f32 %v250, 0.0
  %v289 = vmax.f32 %v253, 0.0
  %v290 = vmax.f32 %v256, 0.0
  %v291 = vmax.f32 %v259, 0.0
  %vm292 = vcmask 130048
  %293 = vst.msk [vmem:[%s3] sm:$0xff] %vm292, %v261
  %294 = vst.msk [vmem:[%s3 + $0x8] sm:$0xff] %vm292, %v262
  %295 = vst.msk [vmem:[%s3 + $0x10] sm:$0xff] %vm292, %v263
  %296 = vst.msk [vmem:[%s3 + $0x18] sm:$0xff] %vm292, %v264
  %297 = vst.msk [vmem:[%s3 + $0x20] sm:$0xff] %vm292, %v265
  %298 = vst.msk [vmem:[%s3 + $0x28] sm:$0xff] %vm292, %v266
  %299 = vst.msk [vmem:[%s3 + $0x30] sm:$0xff] %vm292, %v267
  %300 = vst.msk [vmem:[%s3 + $0x38] sm:$0xff] %vm292, %v268
  %301 = vst.msk [vmem:[%s3 + $0x40] sm:$0xff] %vm292, %v269
  %302 = vst.msk [vmem:[%s3 + $0x48] sm:$0xff] %vm292, %v270
  %303 = vst.msk [vmem:[%s3 + $0x50] sm:$0xff] %vm292, %v271
  %304 = vst.msk [vmem:[%s3 + $0x58] sm:$0xff] %vm292, %v272
  %305 = vst.msk [vmem:[%s3 + $0x60] sm:$0xff] %vm292, %v273
  %306 = vst.msk [vmem:[%s3 + $0x68] sm:$0xff] %vm292, %v274
  %307 = vst.msk [vmem:[%s3 + $0x70] sm:$0xff] %vm292, %v275
  %308 = vst.msk [vmem:[%s3 + $0x78] sm:$0xff] %vm292, %v276
  %309 = vst.msk [vmem:[%s3 + $0x80] sm:$0xff] %vm292, %v277
  %310 = vst.msk [vmem:[%s3 + $0x88] sm:$0xff] %vm292, %v278
  %311 = vst.msk [vmem:[%s3 + $0x90] sm:$0xff] %vm292, %v279
  %312 = vst.msk [vmem:[%s3 + $0x98] sm:$0xff] %vm292, %v280
  %313 = vst.msk [vmem:[%s3 + $0xa0] sm:$0xff] %vm292, %v281
  %314 = vst.msk [vmem:[%s3 + $0xa8] sm:$0xff] %vm292, %v282
  %315 = vst.msk [vmem:[%s3 + $0xb0] sm:$0xff] %vm292, %v283
  %316 = vst.msk [vmem:[%s3 + $0xb8] sm:$0xff] %vm292, %v284
  %317 = vst.msk [vmem:[%s3 + $0xc0] sm:$0xff] %vm292, %v285
  %318 = vst.msk [vmem:[%s3 + $0xc8] sm:$0xff] %vm292, %v286
  %319 = vst.msk [vmem:[%s3 + $0xd0] sm:$0xff] %vm292, %v287
  %320 = vst.msk [vmem:[%s3 + $0xd8] sm:$0xff] %vm292, %v288
  %321 = vst.msk [vmem:[%s3 + $0xe0] sm:$0xff] %vm292, %v289
  %322 = vst.msk [vmem:[%s3 + $0xe8] sm:$0xff] %vm292, %v290
  %323 = vst.msk [vmem:[%s3 + $0xf0] sm:$0xff] %vm292, %v291
  // Predicated region
  $region14: #{pcn1_forward.4} parent=0 // pred_check
    _
  $region15: #{pcn1_forward.4} parent=0 // pred_check_branch
    %325 = sbr.rel (0) target = $region17
  $region16: #{pcn1_forward.4} parent=0 // pred_region
    _
  $region17: #{pcn1_forward.4} parent=0 // pred_fallthru
    _
  // Predicated region
  $region18: #{pcn1_forward.4} parent=0 // pred_check
    _
  $region19: #{pcn1_forward.4} parent=0 // pred_check_branch
    %327 = sbr.rel (0) target = $region21
  $region20: #{pcn1_forward.4} parent=0 // pred_region
    _
  $region21: #{pcn1_forward.4} parent=0 // pred_fallthru
    _

// kernel: pcn1_forward.5
$region0: #{pcn1_forward.5}
  #allocation0 [shape = 'u32[]', space=smem, size = 0x4, offset = 0x4, fixed_abs, tag = 'smem constant byte address 0x4 - core index']
  #allocation1 [shape = 'u32[72,128]{1,0:T(1,128)}', space=vmem, size = 0x9000, scoped, tag = 'internal scratch']
  %s0 = inlined_call_operand.vmem [shape: f32[56,144], index: 0, kind: input, shape index: {}]
  %s1 = inlined_call_operand.vmem [shape: f32[144,32], index: 1, kind: input, shape index: {}]
  %s2 = inlined_call_operand.vmem [shape: f32[1,32], index: 2, kind: input, shape index: {}]
  %s3 = inlined_call_operand.vmem [shape: f32[56,32], index: 3, kind: output, shape index: {}]
  %s4 = sld [smem:[#allocation0]]
  $region22: #{pcn1_forward.5} parent=0
    _
  %s6 = ssub.s32 1, %s4
  %s7 = scalar_select 0, %s6, %s4
  // Predicated region
  $region2: #{pcn1_forward.5} parent=0 // pred_check
    _
  $region3: #{pcn1_forward.5} parent=0 // pred_check_branch
    %9 = sbr.rel (0) target = $region5
  $region4: #{pcn1_forward.5} parent=0 // pred_region
    _
  $region5: #{pcn1_forward.5} parent=0 // pred_fallthru
    _
  // Predicated region
  $region6: #{pcn1_forward.5} parent=0 // pred_check
    _
  $region7: #{pcn1_forward.5} parent=0 // pred_check_branch
    %11 = sbr.rel (0) target = $region9
  $region8: #{pcn1_forward.5} parent=0 // pred_region
    _
  $region9: #{pcn1_forward.5} parent=0 // pred_fallthru
    _
  // Predicated region
  $region10: #{pcn1_forward.5} parent=0 // pred_check
    _
  $region11: #{pcn1_forward.5} parent=0 // pred_check_branch
    %13 = sbr.rel (0) target = $region13
  $region12: #{pcn1_forward.5} parent=0 // pred_region
    _
  $region13: #{pcn1_forward.5} parent=0 // pred_fallthru
    _
  %v14 = vld [vmem:[%s0] sm:$0xff]
  %v15 = vld [vmem:[%s0 + $0x8] sm:$0xff]
  %v16 = vld [vmem:[%s0 + $0x10] sm:$0xff]
  %v17 = vld [vmem:[%s0 + $0x18] sm:$0xff]
  %v18 = vld [vmem:[%s0 + $0x20] sm:$0xff]
  %v19 = vld [vmem:[%s0 + $0x28] sm:$0xff]
  %v20 = vld [vmem:[%s0 + $0x30] sm:$0xff]
  %v21 = vld [vmem:[%s0 + $0x38] sm:$0xff]
  %v22 = vld [vmem:[%s0 + $0x40] sm:$0xff]
  %v23 = vld [vmem:[%s0 + $0x48] sm:$0xff]
  %v24 = vld [vmem:[%s0 + $0x50] sm:$0xff]
  %v25 = vld [vmem:[%s0 + $0x58] sm:$0xff]
  %v26 = vld [vmem:[%s0 + $0x60] sm:$0xff]
  %v27 = vld [vmem:[%s0 + $0x68] sm:$0xff]
  %v28 = vld [vmem:[%s1] sm:$0xff]
  %v29 = vld [vmem:[%s1 + $0x8] sm:$0xff]
  %v30 = vld [vmem:[%s1 + $0x10] sm:$0xff]
  %v31 = vld [vmem:[%s1 + $0x18] sm:$0xff]
  %v32 = vld [vmem:[%s1 + $0x20] sm:$0xff]
  %v33 = vld [vmem:[%s1 + $0x28] sm:$0xff]
  %v34 = vld [vmem:[%s1 + $0x30] sm:$0xff]
  %v35 = vld [vmem:[%s1 + $0x38] sm:$0xff]
  %v36 = vld [vmem:[%s1 + $0x40] sm:$0xff]
  %v37 = vld [vmem:[%s1 + $0x48] sm:$0xff]
  %v38 = vld [vmem:[%s1 + $0x50] sm:$0xff]
  %v39 = vld [vmem:[%s1 + $0x58] sm:$0xff]
  %v40 = vld [vmem:[%s1 + $0x60] sm:$0xff]
  %v41 = vld [vmem:[%s1 + $0x68] sm:$0xff]
  %v42 = vld [vmem:[%s1 + $0x70] sm:$0xff]
  %v43 = vld [vmem:[%s1 + $0x78] sm:$0xff]
  %v44 = vld [vmem:[%s1 + $0x80] sm:$0xff]
  %v45 = vld [vmem:[%s1 + $0x88] sm:$0xff]
  %v46 = vld [vmem:[%s2] sm:$0x1]
  %v48 = vperm.slane %v46, 0
  %vm50 = vcmask 130048
  %v52 = vsel %vm50, %v15, 0
  %v55 = vsel %vm50, %v17, 0
  %v58 = vsel %vm50, %v19, 0
  %v61 = vsel %vm50, %v21, 0
  %v64 = vsel %vm50, %v23, 0
  %v67 = vsel %vm50, %v25, 0
  %v70 = vsel %vm50, %v27, 0
  %72 = vmatpush.msra.mxu0 %v43
  %73 = vmatpush.msra.mxu0 %v42
  %74 = vmatpush.msra.mxu0 %v41
  %75 = vmatpush.msra.mxu0 %v40
  %76 = vmatpush.msra.mxu0 %v39
  %77 = vmatpush.msra.mxu0 %v38
  %78 = vmatpush.msra.mxu0 %v37
  %79 = vmatpush.msra.mxu0 %v36
  %80 = vmatpush.msra.mxu0 %v35
  %81 = vmatpush.msra.mxu0 %v34
  %82 = vmatpush.msra.mxu0 %v33
  %83 = vmatpush.msra.mxu0 %v32
  %84 = vmatpush.msra.mxu0 %v31
  %85 = vmatpush.msra.mxu0 %v30
  %86 = vmatpush.msra.mxu0 %v29
  %87 = vmatpush.msra.mxu0 %v28
  %88 = vmatmul.f32.gmra.mxu0 %v14
  %v89 = vpop.f32.mrf.mxu0
  %v90 = vadd.f32 %v48, %v89
  %91 = vmatmul.f32.gmra.mxu0 %v16
  %v92 = vpop.f32.mrf.mxu0
  %v93 = vadd.f32 %v48, %v92
  %94 = vmatmul.f32.gmra.mxu0 %v18
  %v95 = vpop.f32.mrf.mxu0
  %v96 = vadd.f32 %v48, %v95
  %97 = vmatmul.f32.gmra.mxu0 %v20
  %v98 = vpop.f32.mrf.mxu0
  %v99 = vadd.f32 %v48, %v98
  %100 = vmatmul.f32.gmra.mxu0 %v22
  %v101 = vpop.f32.mrf.mxu0
  %v102 = vadd.f32 %v48, %v101
  %103 = vmatmul.f32.gmra.mxu0 %v24
  %v104 = vpop.f32.mrf.mxu0
  %v105 = vadd.f32 %v48, %v104
  %106 = vmatmul.f32.gmra.mxu0 %v26
  %v107 = vpop.f32.mrf.mxu0
  %v108 = vadd.f32 %v48, %v107
  %109 = vdwg.mxu0
  %110 = vmatpush.msra.mxu0 0.0
  %111 = vmatpush.msra.mxu0 0.0
  %112 = vmatpush.msra.mxu0 0.0
  %113 = vmatpush.msra.mxu0 0.0
  %114 = vmatpush.msra.mxu0 0.0
  %115 = vmatpush.msra.mxu0 0.0
  %116 = vmatpush.msra.mxu0 0.0
  %117 = vmatpush.msra.mxu0 0.0
  %118 = vmatpush.msra.mxu0 0.0
  %119 = vmatpush.msra.mxu0 0.0
  %120 = vmatpush.msra.mxu0 0.0
  %121 = vmatpush.msra.mxu0 0.0
  %122 = vmatpush.msra.mxu0 0.0
  %123 = vmatpush.msra.mxu0 0.0
  %124 = vmatpush.msra.mxu0 %v45
  %125 = vmatpush.msra.mxu0 %v44
  %126 = vmatmul.f32.gmra.mxu0 %v52
  %v127 = vpop.f32.mrf.mxu0
  %v128 = vadd.f32 %v90, %v127
  %129 = vmatmul.f32.gmra.mxu0 %v55
  %v130 = vpop.f32.mrf.mxu0
  %v131 = vadd.f32 %v93, %v130
  %132 = vmatmul.f32.gmra.mxu0 %v58
  %v133 = vpop.f32.mrf.mxu0
  %v134 = vadd.f32 %v96, %v133
  %135 = vmatmul.f32.gmra.mxu0 %v61
  %v136 = vpop.f32.mrf.mxu0
  %v137 = vadd.f32 %v99, %v136
  %138 = vmatmul.f32.gmra.mxu0 %v64
  %v139 = vpop.f32.mrf.mxu0
  %v140 = vadd.f32 %v102, %v139
  %141 = vmatmul.f32.gmra.mxu0 %v67
  %v142 = vpop.f32.mrf.mxu0
  %v143 = vadd.f32 %v105, %v142
  %144 = vmatmul.f32.gmra.mxu0 %v70
  %v145 = vpop.f32.mrf.mxu0
  %v146 = vadd.f32 %v108, %v145
  %147 = vdwg.mxu0
  %v148 = vmax.f32 %v128, 0.0
  %v149 = vmax.f32 %v131, 0.0
  %v150 = vmax.f32 %v134, 0.0
  %v151 = vmax.f32 %v137, 0.0
  %v152 = vmax.f32 %v140, 0.0
  %v153 = vmax.f32 %v143, 0.0
  %v154 = vmax.f32 %v146, 0.0
  %vm155 = vcmask 261120
  %156 = vst.msk [vmem:[%s3] sm:$0xff] %vm155, %v148
  %157 = vst.msk [vmem:[%s3 + $0x8] sm:$0xff] %vm155, %v149
  %158 = vst.msk [vmem:[%s3 + $0x10] sm:$0xff] %vm155, %v150
  %159 = vst.msk [vmem:[%s3 + $0x18] sm:$0xff] %vm155, %v151
  %160 = vst.msk [vmem:[%s3 + $0x20] sm:$0xff] %vm155, %v152
  %161 = vst.msk [vmem:[%s3 + $0x28] sm:$0xff] %vm155, %v153
  %162 = vst.msk [vmem:[%s3 + $0x30] sm:$0xff] %vm155, %v154
  // Predicated region
  $region14: #{pcn1_forward.5} parent=0 // pred_check
    _
  $region15: #{pcn1_forward.5} parent=0 // pred_check_branch
    %164 = sbr.rel (0) target = $region17
  $region16: #{pcn1_forward.5} parent=0 // pred_region
    _
  $region17: #{pcn1_forward.5} parent=0 // pred_fallthru
    _
  // Predicated region
  $region18: #{pcn1_forward.5} parent=0 // pred_check
    _
  $region19: #{pcn1_forward.5} parent=0 // pred_check_branch
    %166 = sbr.rel (0) target = $region21
  $region20: #{pcn1_forward.5} parent=0 // pred_region
    _
  $region21: #{pcn1_forward.5} parent=0 // pred_fallthru
    _

// kernel: pcn1_forward.6
$region0: #{pcn1_forward.6}
  #allocation0 [shape = 'u32[]', space=smem, size = 0x4, offset = 0x4, fixed_abs, tag = 'smem constant byte address 0x4 - core index']
  #allocation1 [shape = 'u32[72,128]{1,0:T(1,128)}', space=vmem, size = 0x9000, scoped, tag = 'internal scratch']
  %s0 = inlined_call_operand.vmem [shape: f32[8,288], index: 0, kind: input, shape index: {}]
  %s1 = inlined_call_operand.vmem [shape: f32[288,64], index: 1, kind: input, shape index: {}]
  %s2 = inlined_call_operand.vmem [shape: f32[1,64], index: 2, kind: input, shape index: {}]
  %s3 = inlined_call_operand.vmem [shape: f32[8,64], index: 3, kind: output, shape index: {}]
  %s4 = sld [smem:[#allocation0]]
  $region22: #{pcn1_forward.6} parent=0
    _
  %s6 = ssub.s32 1, %s4
  %s7 = scalar_select 0, %s6, %s4
  // Predicated region
  $region2: #{pcn1_forward.6} parent=0 // pred_check
    _
  $region3: #{pcn1_forward.6} parent=0 // pred_check_branch
    %9 = sbr.rel (0) target = $region5
  $region4: #{pcn1_forward.6} parent=0 // pred_region
    _
  $region5: #{pcn1_forward.6} parent=0 // pred_fallthru
    _
  // Predicated region
  $region6: #{pcn1_forward.6} parent=0 // pred_check
    _
  $region7: #{pcn1_forward.6} parent=0 // pred_check_branch
    %11 = sbr.rel (0) target = $region9
  $region8: #{pcn1_forward.6} parent=0 // pred_region
    _
  $region9: #{pcn1_forward.6} parent=0 // pred_fallthru
    _
  // Predicated region
  $region10: #{pcn1_forward.6} parent=0 // pred_check
    _
  $region11: #{pcn1_forward.6} parent=0 // pred_check_branch
    %13 = sbr.rel (0) target = $region13
  $region12: #{pcn1_forward.6} parent=0 // pred_region
    _
  $region13: #{pcn1_forward.6} parent=0 // pred_fallthru
    _
  %v14 = vld [vmem:[%s0] sm:$0xff]
  %v15 = vld [vmem:[%s0 + $0x8] sm:$0xff]
  %v16 = vld [vmem:[%s0 + $0x10] sm:$0xff]
  %v17 = vld [vmem:[%s1] sm:$0xff]
  %v18 = vld [vmem:[%s1 + $0x8] sm:$0xff]
  %v19 = vld [vmem:[%s1 + $0x10] sm:$0xff]
  %v20 = vld [vmem:[%s1 + $0x18] sm:$0xff]
  %v21 = vld [vmem:[%s1 + $0x20] sm:$0xff]
  %v22 = vld [vmem:[%s1 + $0x28] sm:$0xff]
  %v23 = vld [vmem:[%s1 + $0x30] sm:$0xff]
  %v24 = vld [vmem:[%s1 + $0x38] sm:$0xff]
  %v25 = vld [vmem:[%s1 + $0x40] sm:$0xff]
  %v26 = vld [vmem:[%s1 + $0x48] sm:$0xff]
  %v27 = vld [vmem:[%s1 + $0x50] sm:$0xff]
  %v28 = vld [vmem:[%s1 + $0x58] sm:$0xff]
  %v29 = vld [vmem:[%s1 + $0x60] sm:$0xff]
  %v30 = vld [vmem:[%s1 + $0x68] sm:$0xff]
  %v31 = vld [vmem:[%s1 + $0x70] sm:$0xff]
  %v32 = vld [vmem:[%s1 + $0x78] sm:$0xff]
  %v33 = vld [vmem:[%s1 + $0x80] sm:$0xff]
  %v34 = vld [vmem:[%s1 + $0x88] sm:$0xff]
  %v35 = vld [vmem:[%s1 + $0x90] sm:$0xff]
  %v36 = vld [vmem:[%s1 + $0x98] sm:$0xff]
  %v37 = vld [vmem:[%s1 + $0xa0] sm:$0xff]
  %v38 = vld [vmem:[%s1 + $0xa8] sm:$0xff]
  %v39 = vld [vmem:[%s1 + $0xb0] sm:$0xff]
  %v40 = vld [vmem:[%s1 + $0xb8] sm:$0xff]
  %v41 = vld [vmem:[%s1 + $0xc0] sm:$0xff]
  %v42 = vld [vmem:[%s1 + $0xc8] sm:$0xff]
  %v43 = vld [vmem:[%s1 + $0xd0] sm:$0xff]
  %v44 = vld [vmem:[%s1 + $0xd8] sm:$0xff]
  %v45 = vld [vmem:[%s1 + $0xe0] sm:$0xff]
  %v46 = vld [vmem:[%s1 + $0xe8] sm:$0xff]
  %v47 = vld [vmem:[%s1 + $0xf0] sm:$0xff]
  %v48 = vld [vmem:[%s1 + $0xf8] sm:$0xff]
  %v49 = vld [vmem:[%s1 + $0x100] sm:$0xff]
  %v50 = vld [vmem:[%s1 + $0x108] sm:$0xff]
  %v51 = vld [vmem:[%s1 + $0x110] sm:$0xff]
  %v52 = vld [vmem:[%s1 + $0x118] sm:$0xff]
  %v53 = vld [vmem:[%s2] sm:$0x1]
  %v55 = vperm.slane %v53, 0
  %vm57 = vcmask 261120
  %v59 = vsel %vm57, %v16, 0
  %61 = vmatpush.msra.mxu0 %v32
  %62 = vmatpush.msra.mxu0 %v31
  %63 = vmatpush.msra.mxu0 %v30
  %64 = vmatpush.msra.mxu0 %v29
  %65 = vmatpush.msra.mxu0 %v28
  %66 = vmatpush.msra.mxu0 %v27
  %67 = vmatpush.msra.mxu0 %v26
  %68 = vmatpush.msra.mxu0 %v25
  %69 = vmatpush.msra.mxu0 %v24
  %70 = vmatpush.msra.mxu0 %v23
  %71 = vmatpush.msra.mxu0 %v22
  %72 = vmatpush.msra.mxu0 %v21
  %73 = vmatpush.msra.mxu0 %v20
  %74 = vmatpush.msra.mxu0 %v19
  %75 = vmatpush.msra.mxu0 %v18
  %76 = vmatpush.msra.mxu0 %v17
  %77 = vmatmul.f32.gmra.mxu0 %v14
  %v78 = vpop.f32.mrf.mxu0
  %v79 = vadd.f32 %v55, %v78
  %80 = vdwg.mxu0
  %81 = vmatpush.msra.mxu0 %v48
  %82 = vmatpush.msra.mxu0 %v47
  %83 = vmatpush.msra.mxu0 %v46
  %84 = vmatpush.msra.mxu0 %v45
  %85 = vmatpush.msra.mxu0 %v44
  %86 = vmatpush.msra.mxu0 %v43
  %87 = vmatpush.msra.mxu0 %v42
  %88 = vmatpush.msra.mxu0 %v41
  %89 = vmatpush.msra.mxu0 %v40
  %90 = vmatpush.msra.mxu0 %v39
  %91 = vmatpush.msra.mxu0 %v38
  %92 = vmatpush.msra.mxu0 %v37
  %93 = vmatpush.msra.mxu0 %v36
  %94 = vmatpush.msra.mxu0 %v35
  %95 = vmatpush.msra.mxu0 %v34
  %96 = vmatpush.msra.mxu0 %v33
  %97 = vmatmul.f32.gmra.mxu0 %v15
  %v98 = vpop.f32.mrf.mxu0
  %v99 = vadd.f32 %v79, %v98
  %100 = vdwg.mxu0
  %101 = vmatpush.msra.mxu0 0.0
  %102 = vmatpush.msra.mxu0 0.0
  %103 = vmatpush.msra.mxu0 0.0
  %104 = vmatpush.msra.mxu0 0.0
  %105 = vmatpush.msra.mxu0 0.0
  %106 = vmatpush.msra.mxu0 0.0
  %107 = vmatpush.msra.mxu0 0.0
  %108 = vmatpush.msra.mxu0 0.0
  %109 = vmatpush.msra.mxu0 0.0
  %110 = vmatpush.msra.mxu0 0.0
  %111 = vmatpush.msra.mxu0 0.0
  %112 = vmatpush.msra.mxu0 0.0
  %113 = vmatpush.msra.mxu0 %v52
  %114 = vmatpush.msra.mxu0 %v51
  %115 = vmatpush.msra.mxu0 %v50
  %116 = vmatpush.msra.mxu0 %v49
  %117 = vmatmul.f32.gmra.mxu0 %v59
  %v118 = vpop.f32.mrf.mxu0
  %v119 = vadd.f32 %v99, %v118
  %120 = vdwg.mxu0
  %v121 = vmax.f32 %v119, 0.0
  %vm122 = vcmask 523264
  %123 = vst.msk [vmem:[%s3] sm:$0xff] %vm122, %v121
  // Predicated region
  $region14: #{pcn1_forward.6} parent=0 // pred_check
    _
  $region15: #{pcn1_forward.6} parent=0 // pred_check_branch
    %125 = sbr.rel (0) target = $region17
  $region16: #{pcn1_forward.6} parent=0 // pred_region
    _
  $region17: #{pcn1_forward.6} parent=0 // pred_fallthru
    _
  // Predicated region
  $region18: #{pcn1_forward.6} parent=0 // pred_check
    _
  $region19: #{pcn1_forward.6} parent=0 // pred_check_branch
    %127 = sbr.rel (0) target = $region21
  $region20: #{pcn1_forward.6} parent=0 // pred_region
    _
  $region21: #{pcn1_forward.6} parent=0 // pred_fallthru
    _

// kernel: pcn1_forward.7
$region0: #{pcn1_forward.7}
  #allocation0 [shape = 'u32[]', space=smem, size = 0x4, offset = 0x4, fixed_abs, tag = 'smem constant byte address 0x4 - core index']
  #allocation1 [shape = 'u32[72,128]{1,0:T(1,128)}', space=vmem, size = 0x9000, scoped, tag = 'internal scratch']
  %s0 = inlined_call_operand.vmem [shape: f32[8,256], index: 0, kind: input, shape index: {}]
  %s1 = inlined_call_operand.vmem [shape: f32[256,128], index: 1, kind: input, shape index: {}]
  %s2 = inlined_call_operand.vmem [shape: f32[1,128], index: 2, kind: input, shape index: {}]
  %s3 = inlined_call_operand.vmem [shape: f32[128,8], index: 3, kind: input, shape index: {}]
  %s4 = inlined_call_operand.vmem [shape: f32[1,8], index: 4, kind: input, shape index: {}]
  %s5 = inlined_call_operand.vmem [shape: f32[8,8], index: 5, kind: output, shape index: {}]
  %s6 = sld [smem:[#allocation0]]
  $region30: #{pcn1_forward.7} parent=0
    _
  %s8 = ssub.s32 1, %s6
  %s9 = scalar_select 0, %s8, %s6
  // Predicated region
  $region2: #{pcn1_forward.7} parent=0 // pred_check
    _
  $region3: #{pcn1_forward.7} parent=0 // pred_check_branch
    %11 = sbr.rel (0) target = $region5
  $region4: #{pcn1_forward.7} parent=0 // pred_region
    _
  $region5: #{pcn1_forward.7} parent=0 // pred_fallthru
    _
  // Predicated region
  $region6: #{pcn1_forward.7} parent=0 // pred_check
    _
  $region7: #{pcn1_forward.7} parent=0 // pred_check_branch
    %13 = sbr.rel (0) target = $region9
  $region8: #{pcn1_forward.7} parent=0 // pred_region
    _
  $region9: #{pcn1_forward.7} parent=0 // pred_fallthru
    _
  // Predicated region
  $region10: #{pcn1_forward.7} parent=0 // pred_check
    _
  $region11: #{pcn1_forward.7} parent=0 // pred_check_branch
    %15 = sbr.rel (0) target = $region13
  $region12: #{pcn1_forward.7} parent=0 // pred_region
    _
  $region13: #{pcn1_forward.7} parent=0 // pred_fallthru
    _
  // Predicated region
  $region14: #{pcn1_forward.7} parent=0 // pred_check
    _
  $region15: #{pcn1_forward.7} parent=0 // pred_check_branch
    %17 = sbr.rel (0) target = $region17
  $region16: #{pcn1_forward.7} parent=0 // pred_region
    _
  $region17: #{pcn1_forward.7} parent=0 // pred_fallthru
    _
  // Predicated region
  $region18: #{pcn1_forward.7} parent=0 // pred_check
    _
  $region19: #{pcn1_forward.7} parent=0 // pred_check_branch
    %19 = sbr.rel (0) target = $region21
  $region20: #{pcn1_forward.7} parent=0 // pred_region
    _
  $region21: #{pcn1_forward.7} parent=0 // pred_fallthru
    _
  %v20 = vld [vmem:[%s0] sm:$0xff]
  %v21 = vld [vmem:[%s0 + $0x8] sm:$0xff]
  %v22 = vld [vmem:[%s1] sm:$0xff]
  %v23 = vld [vmem:[%s1 + $0x8] sm:$0xff]
  %v24 = vld [vmem:[%s1 + $0x10] sm:$0xff]
  %v25 = vld [vmem:[%s1 + $0x18] sm:$0xff]
  %v26 = vld [vmem:[%s1 + $0x20] sm:$0xff]
  %v27 = vld [vmem:[%s1 + $0x28] sm:$0xff]
  %v28 = vld [vmem:[%s1 + $0x30] sm:$0xff]
  %v29 = vld [vmem:[%s1 + $0x38] sm:$0xff]
  %v30 = vld [vmem:[%s1 + $0x40] sm:$0xff]
  %v31 = vld [vmem:[%s1 + $0x48] sm:$0xff]
  %v32 = vld [vmem:[%s1 + $0x50] sm:$0xff]
  %v33 = vld [vmem:[%s1 + $0x58] sm:$0xff]
  %v34 = vld [vmem:[%s1 + $0x60] sm:$0xff]
  %v35 = vld [vmem:[%s1 + $0x68] sm:$0xff]
  %v36 = vld [vmem:[%s1 + $0x70] sm:$0xff]
  %v37 = vld [vmem:[%s1 + $0x78] sm:$0xff]
  %v38 = vld [vmem:[%s1 + $0x80] sm:$0xff]
  %v39 = vld [vmem:[%s1 + $0x88] sm:$0xff]
  %v40 = vld [vmem:[%s1 + $0x90] sm:$0xff]
  %v41 = vld [vmem:[%s1 + $0x98] sm:$0xff]
  %v42 = vld [vmem:[%s1 + $0xa0] sm:$0xff]
  %v43 = vld [vmem:[%s1 + $0xa8] sm:$0xff]
  %v44 = vld [vmem:[%s1 + $0xb0] sm:$0xff]
  %v45 = vld [vmem:[%s1 + $0xb8] sm:$0xff]
  %v46 = vld [vmem:[%s1 + $0xc0] sm:$0xff]
  %v47 = vld [vmem:[%s1 + $0xc8] sm:$0xff]
  %v48 = vld [vmem:[%s1 + $0xd0] sm:$0xff]
  %v49 = vld [vmem:[%s1 + $0xd8] sm:$0xff]
  %v50 = vld [vmem:[%s1 + $0xe0] sm:$0xff]
  %v51 = vld [vmem:[%s1 + $0xe8] sm:$0xff]
  %v52 = vld [vmem:[%s1 + $0xf0] sm:$0xff]
  %v53 = vld [vmem:[%s1 + $0xf8] sm:$0xff]
  %v54 = vld [vmem:[%s2] sm:$0x1]
  %v56 = vperm.slane %v54, 0
  %58 = vmatpush.msra.mxu0 %v37
  %59 = vmatpush.msra.mxu0 %v36
  %60 = vmatpush.msra.mxu0 %v35
  %61 = vmatpush.msra.mxu0 %v34
  %62 = vmatpush.msra.mxu0 %v33
  %63 = vmatpush.msra.mxu0 %v32
  %64 = vmatpush.msra.mxu0 %v31
  %65 = vmatpush.msra.mxu0 %v30
  %66 = vmatpush.msra.mxu0 %v29
  %67 = vmatpush.msra.mxu0 %v28
  %68 = vmatpush.msra.mxu0 %v27
  %69 = vmatpush.msra.mxu0 %v26
  %70 = vmatpush.msra.mxu0 %v25
  %71 = vmatpush.msra.mxu0 %v24
  %72 = vmatpush.msra.mxu0 %v23
  %73 = vmatpush.msra.mxu0 %v22
  %74 = vmatmul.f32.gmra.mxu0 %v20
  %v75 = vpop.f32.mrf.mxu0
  %v76 = vadd.f32 %v56, %v75
  %77 = vdwg.mxu0
  %78 = vmatpush.msra.mxu0 %v53
  %79 = vmatpush.msra.mxu0 %v52
  %80 = vmatpush.msra.mxu0 %v51
  %81 = vmatpush.msra.mxu0 %v50
  %82 = vmatpush.msra.mxu0 %v49
  %83 = vmatpush.msra.mxu0 %v48
  %84 = vmatpush.msra.mxu0 %v47
  %85 = vmatpush.msra.mxu0 %v46
  %86 = vmatpush.msra.mxu0 %v45
  %87 = vmatpush.msra.mxu0 %v44
  %88 = vmatpush.msra.mxu0 %v43
  %89 = vmatpush.msra.mxu0 %v42
  %90 = vmatpush.msra.mxu0 %v41
  %91 = vmatpush.msra.mxu0 %v40
  %92 = vmatpush.msra.mxu0 %v39
  %93 = vmatpush.msra.mxu0 %v38
  %94 = vmatmul.f32.gmra.mxu0 %v21
  %v95 = vpop.f32.mrf.mxu0
  %v96 = vadd.f32 %v76, %v95
  %97 = vdwg.mxu0
  %v98 = vmax.f32 %v96, 0.0
  %v99 = vld [vmem:[%s3] sm:$0xff]
  %v100 = vld [vmem:[%s3 + $0x8] sm:$0xff]
  %v101 = vld [vmem:[%s3 + $0x10] sm:$0xff]
  %v102 = vld [vmem:[%s3 + $0x18] sm:$0xff]
  %v103 = vld [vmem:[%s3 + $0x20] sm:$0xff]
  %v104 = vld [vmem:[%s3 + $0x28] sm:$0xff]
  %v105 = vld [vmem:[%s3 + $0x30] sm:$0xff]
  %v106 = vld [vmem:[%s3 + $0x38] sm:$0xff]
  %v107 = vld [vmem:[%s3 + $0x40] sm:$0xff]
  %v108 = vld [vmem:[%s3 + $0x48] sm:$0xff]
  %v109 = vld [vmem:[%s3 + $0x50] sm:$0xff]
  %v110 = vld [vmem:[%s3 + $0x58] sm:$0xff]
  %v111 = vld [vmem:[%s3 + $0x60] sm:$0xff]
  %v112 = vld [vmem:[%s3 + $0x68] sm:$0xff]
  %v113 = vld [vmem:[%s3 + $0x70] sm:$0xff]
  %v114 = vld [vmem:[%s3 + $0x78] sm:$0xff]
  %v115 = vld [vmem:[%s4] sm:$0x1]
  %v117 = vperm.slane %v115, 0
  %119 = vmatpush.msra.mxu0 %v114
  %120 = vmatpush.msra.mxu0 %v113
  %121 = vmatpush.msra.mxu0 %v112
  %122 = vmatpush.msra.mxu0 %v111
  %123 = vmatpush.msra.mxu0 %v110
  %124 = vmatpush.msra.mxu0 %v109
  %125 = vmatpush.msra.mxu0 %v108
  %126 = vmatpush.msra.mxu0 %v107
  %127 = vmatpush.msra.mxu0 %v106
  %128 = vmatpush.msra.mxu0 %v105
  %129 = vmatpush.msra.mxu0 %v104
  %130 = vmatpush.msra.mxu0 %v103
  %131 = vmatpush.msra.mxu0 %v102
  %132 = vmatpush.msra.mxu0 %v101
  %133 = vmatpush.msra.mxu0 %v100
  %134 = vmatpush.msra.mxu0 %v99
  %135 = vmatmul.f32.gmra.mxu0 %v98
  %v136 = vpop.f32.mrf.mxu0
  %v137 = vadd.f32 %v117, %v136
  %138 = vdwg.mxu0
  %vm139 = vcmask 15360
  %v140 = vsel %vm139, %v137, -inf
  %141 = vmax.xlane.f32.xlu0 %v140
  %v142 = vpop.xlane.xlu0 %141
  %v143 = vsub.f32 %v137, %v142
  %v144 = vmul.f32 %v143, 1.442695
  %v145 = vpow.pop %v144
  %v146 = vsel %vm139, %v145, 0.0
  %147 = vadd.xlane.f32.xlu0 %v146
  %v148 = vpop.xlane.xlu0 %147
  %v149 = vrcp.pop %v148
  %v150 = vmul.f32 %v148, %v149
  %v151 = vsub.f32 1.0, %v150
  %v152 = vmul.f32 %v149, %v151
  %v153 = vadd.f32 %v149, %v152
  %vm154 = vweird.f32 %v148
  %vm155 = vweird.f32 %v149
  %vm156 = vmor %vm154, %vm155
  %v157 = vsel %vm156, %v149, %v153
  %v158 = vand.u32 2147483647, %v148
  %vm159 = vcmp.eq.f32.partialorder %v158, 8.507059e+37
  %v160 = vand.u32 %v148, 2147483648
  %v161 = vor.u32 1.1754944e-38, %v160
  %v162 = vsel %vm159, %v161, %v157
  %v163 = vmul.f32 %v145, %v162
  %vm164 = vcmask 31760
  %v165 = vsel %vm164, %v137, -inf
  %166 = vmax.xlane.f32.xlu0 %v165
  %v167 = vpop.xlane.xlu0 %166
  %v168 = vsub.f32 %v137, %v167
  %v169 = vmul.f32 %v168, 1.442695
  %v170 = vpow.pop %v169
  %172 = vrot.lane.b32.xlu0 %v170, 126
  %v173 = vpop.permute.xlu0 %172
  %v175 = vsel %vm139, %v173, 0.0
  %176 = vadd.xlane.f32.xlu0 %v175
  %v177 = vpop.xlane.xlu0 %176
  %v178 = vrcp.pop %v177
  %v179 = vmul.f32 %v177, %v178
  %v180 = vsub.f32 1.0, %v179
  %v181 = vmul.f32 %v178, %v180
  %v182 = vadd.f32 %v178, %v181
  %vm183 = vweird.f32 %v177
  %vm184 = vweird.f32 %v178
  %vm185 = vmor %vm183, %vm184
  %v186 = vsel %vm185, %v178, %v182
  %v187 = vand.u32 2147483647, %v177
  %vm188 = vcmp.eq.f32.partialorder %v187, 8.507059e+37
  %v189 = vand.u32 %v177, 2147483648
  %v190 = vor.u32 1.1754944e-38, %v189
  %v191 = vsel %vm188, %v190, %v186
  %v192 = vmul.f32 %v170, %v191
  %v193 = vsel %vm139, %v163, %v192
  %vm194 = vcmask 31744
  %v195 = vsel %vm194, %v193, %v137
  %vm196 = vcmask 56320
  %v197 = vsel %vm196, %v195, 0.0
  %vm198 = vcmask 64512
  %199 = vst.msk [vmem:[%s5] sm:$0xff] %vm198, %v197
  // Predicated region
  $region22: #{pcn1_forward.7} parent=0 // pred_check
    _
  $region23: #{pcn1_forward.7} parent=0 // pred_check_branch
    %201 = sbr.rel (0) target = $region25
  $region24: #{pcn1_forward.7} parent=0 // pred_region
    _
  $region25: #{pcn1_forward.7} parent=0 // pred_fallthru
    _
  // Predicated region
  $region26: #{pcn1_forward.7} parent=0 // pred_check
    _
  $region27: #{pcn1_forward.7} parent=0 // pred_check_branch
    %203 = sbr.rel (0) target = $region29
  $region28: #{pcn1_forward.7} parent=0 // pred_region
    _
  $region29: #{pcn1_forward.7} parent=0 // pred_fallthru
    _

</llo_original>
